<compile_context>
chip_gen: v6e
topology: v6e:2x2x1
jax: 0.10.0
libtpu: 0.0.40
codegen_flags: <defaults>
</compile_context>

<pallas_src>
import functools

import jax
import jax.numpy as jnp
from jax import lax
from jax.experimental import pallas as pl
from jax.experimental.pallas import tpu as pltpu

_LANES = 128


def _round_up(n, m):
    return ((n + m - 1) // m) * m


def _net_kernel(x_ref, wcat_ref, bcat_ref, w_out_ref, b_out_ref, *, n_dim, n_pad):
    """Fused kernel for one batch tile.

    x_ref:     (bm, D)       input activations                        (VMEM)
    wcat_ref:  (D, 2*Dp)     [fc_w.W^T | fc_b.W^T], lane-padded, resident
    bcat_ref:  (1, 2*Dp)     [fc_w.b   | fc_b.b  ], lane-padded, resident
    w_out_ref: (bm, D)       w = fc_w(x)
    b_out_ref: (1, bm)       b = -||fc_b(x)||^2, lane-dense (batch on lanes)
    """
    x = x_ref[...]

    # Canonical (M,K)x(K,N) MXU matmul against the fused weight, f32 accumulate.
    y = lax.dot_general(
        x,
        wcat_ref[...],
        dimension_numbers=(((1,), (0,)), ((), ())),
        preferred_element_type=jnp.float32,
    ) + bcat_ref[...].astype(jnp.float32)                       # (bm, 2*Dp)

    # fc_w(x): first padded block; only the leading n_dim lanes are real.
    w_out_ref[...] = y[:, :n_dim].astype(w_out_ref.dtype)

    # fc_b(x): second padded block starts on a 128-lane boundary; its padded
    # lanes are exactly zero (zero weight cols + zero bias) so they contribute
    # nothing to the squared norm.
    b_lin = y[:, n_pad:]                                        # (bm, Dp)
    neg_norm = -jnp.sum(b_lin * b_lin, axis=-1, keepdims=True)  # (bm, 1)  VPU+XLU
    b_out_ref[...] = neg_norm.T.astype(b_out_ref.dtype)         # (1, bm) lane-dense


def net_forward(x, w_weight, w_bias, b_weight, b_bias, *, block_b=None):
    """JAX wrapper mirroring Net.forward.

    x:        (B, D) float32
    w_weight: (D, D) PyTorch layout (out, in) for fc_w
    w_bias:   (D,)
    b_weight: (D, D) PyTorch layout (out, in) for fc_b
    b_bias:   (D,)
    Returns (w, b) with shapes ((B, D), (B,)).
    """
    B, D = x.shape
    dtype = x.dtype
    Dp = _round_up(D, _LANES)  # lane-padded width of each fused output block

    # Fused, MXU-canonical weight/bias (one-time XLA transpose+scatter in the
    # wrapper, amortized across all kernel grid steps / calls).
    wcat = jnp.zeros((D, 2 * Dp), dtype)
    wcat = wcat.at[:, :D].set(w_weight.T.astype(dtype))
    wcat = wcat.at[:, Dp:Dp + D].set(b_weight.T.astype(dtype))
    bcat = jnp.zeros((1, 2 * Dp), dtype)
    bcat = bcat.at[:, :D].set(w_bias.reshape(1, D).astype(dtype))
    bcat = bcat.at[:, Dp:Dp + D].set(b_bias.reshape(1, D).astype(dtype))

    # Batch tiling (block_b multiple of 128 whenever grid_b > 1 so the
    # lane-tiled b output blocks stay tile-aligned).
    if block_b is None:
        if B <= 128:
            block_b = B          # single full-dim tile; tiny batches don't
                                 # amortize a split, so keep one grid step
        elif B <= 512:
            block_b = 128        # >=2 tiles -> "parallel" axis can shard
                                 # across v7x's two TensorCores
        else:
            block_b = 256        # fills the 256x256 MXU on v6e/v7x
    grid_b = pl.cdiv(B, block_b)
    B_pad = grid_b * block_b
    x_in = x if B_pad == B else jnp.pad(x, ((0, B_pad - B), (0, 0)))

    # Advisory cost hint for XLA scheduling around the custom call.
    flops = 2 * B_pad * D * (2 * Dp) + B_pad * (2 * Dp) + 3 * B_pad * Dp
    bytes_accessed = 4 * (B_pad * D + D * 2 * Dp + 2 * Dp + B_pad * D + B_pad)

    # Raise the scoped VMEM limit only when the resident fused weight (plus
    # double-buffered activation tiles and the in-kernel y temporary) would
    # bust the ~32 MiB default (large D).
    est_vmem = 4 * (2 * block_b * D        # x tiles (double-buffered)
                    + 2 * D * 2 * Dp       # fused weight
                    + 2 * 2 * Dp           # fused bias
                    + 2 * block_b * D      # w output tiles
                    + 2 * block_b          # b output tiles
                    + 2 * block_b * 2 * Dp)  # y temporary + slack
    vmem_limit = int(min(2 * est_vmem, 56 * 2**20)) if est_vmem > 24 * 2**20 else None
    # TODO(synk): for very large D on v7x (64 MiB/TC), add an "arbitrary" grid
    # axis over the fused output dim (2*Dp) and mark the resident weight/bias
    # specs pipeline_mode=pl.Buffered(1) so they are not double-buffered.
    # TODO(synk): cast x/wcat to bf16 (keep f32 accumulation) on v6e/v7x when
    # accuracy allows — halves weight DMA/VMEM and runs the MXU at native rate.

    w_out, b_out = pl.pallas_call(
        functools.partial(_net_kernel, n_dim=D, n_pad=Dp),
        out_shape=(
            jax.ShapeDtypeStruct((B_pad, D), dtype),
            jax.ShapeDtypeStruct((1, B_pad), dtype),
        ),
        grid=(grid_b,),
        in_specs=[
            pl.BlockSpec((block_b, D), lambda i: (i, 0)),    # x: tile over batch
            pl.BlockSpec((D, 2 * Dp), lambda i: (0, 0)),     # fused weight: resident
            pl.BlockSpec((1, 2 * Dp), lambda i: (0, 0)),     # fused bias:   resident
        ],
        out_specs=(
            pl.BlockSpec((block_b, D), lambda i: (i, 0)),    # w output
            pl.BlockSpec((1, block_b), lambda i: (0, i)),    # b output, lane-tiled
        ),
        compiler_params=pltpu.CompilerParams(
            dimension_semantics=("parallel",),
            vmem_limit_bytes=vmem_limit,
        ),
        cost_estimate=pl.CostEstimate(
            flops=flops, transcendentals=0, bytes_accessed=bytes_accessed
        ),
    )(x_in, wcat, bcat)

    w_out = w_out[:B]
    b_out = b_out.reshape(B_pad)[:B]
    return w_out, b_out


def _reference(x, w_weight, w_bias, b_weight, b_bias):
    hp = lax.Precision.HIGHEST
    w = jnp.dot(x, w_weight.T, precision=hp) + w_bias
    b = jnp.dot(x, b_weight.T, precision=hp) + b_bias
    return w, -jnp.sum(b * b, axis=1)


def _run_case(key, B, D, scale=0.1):
    k_x, k_ww, k_wb, k_bw, k_bb = jax.random.split(key, 5)
    x = jax.random.normal(k_x, (B, D), dtype=jnp.float32)
    w_weight = jax.random.normal(k_ww, (D, D), dtype=jnp.float32) * scale
    w_bias = jax.random.normal(k_wb, (D,), dtype=jnp.float32) * scale
    b_weight = jax.random.normal(k_bw, (D, D), dtype=jnp.float32) * scale
    b_bias = jax.random.normal(k_bb, (D,), dtype=jnp.float32) * scale

    w_out, b_out = net_forward(x, w_weight, w_bias, b_weight, b_bias)
    jax.block_until_ready((w_out, b_out))

    w_ref, b_ref = _reference(x, w_weight, w_bias, b_weight, b_bias)
    assert w_out.shape == (B, D) and b_out.shape == (B,)
    assert jnp.allclose(w_out, w_ref, rtol=1e-3, atol=1e-3), "w mismatch"
    assert jnp.allclose(b_out, b_ref, rtol=1e-3, atol=1e-3), "b mismatch"


if __name__ == "__main__":
    key = jax.random.PRNGKey(0)
    k1, k2 = jax.random.split(key)

    # Small shape consistent with the module (single tile, lane-padded D).
    _run_case(k1, B=8, D=32)
    # Multi-tile path: grid_b=2, non-divisible batch (zero-padded), aligned D.
    _run_case(k2, B=200, D=128, scale=0.05)

    print("KERNEL_OK")
</pallas_src>

<mosaic_0001>
module attributes {stable_mosaic.version = 11 : i64} {
  func.func @_net_kernel(%arg0: i32, %arg1: memref<8x32xf32, #tpu.memory_space<vmem>>, %arg2: memref<32x256xf32, #tpu.memory_space<vmem>>, %arg3: memref<1x256xf32, #tpu.memory_space<vmem>>, %arg4: memref<8x32xf32, #tpu.memory_space<vmem>>, %arg5: memref<1x8xf32, #tpu.memory_space<vmem>>) attributes {dimension_semantics = [#tpu.dimension_semantics<parallel>], iteration_bounds = array<i64: 1>, scalar_prefetch = 0 : i64, scratch_operands = 0 : i64, tpu.core_type = #tpu.core_type<tc>, window_params = [{transform_indices = @transform_0, window_bounds = array<i64: 8, 32>}, {pipeline_mode = #tpu.pipeline_mode<synchronous>, transform_indices = @transform_1, window_bounds = array<i64: 32, 256>}, {pipeline_mode = #tpu.pipeline_mode<synchronous>, transform_indices = @transform_2, window_bounds = array<i64: 1, 256>}, {transform_indices = @transform_3, window_bounds = array<i64: 8, 32>}, {transform_indices = @transform_4, window_bounds = array<i64: 1, 8>}]} {
    %c0 = arith.constant 0 : index
    %c0_0 = arith.constant 0 : index
    %0 = vector.load %arg1[%c0, %c0_0] : memref<8x32xf32, #tpu.memory_space<vmem>>, vector<8x32xf32>
    %c0_1 = arith.constant 0 : index
    %c0_2 = arith.constant 0 : index
    %1 = vector.load %arg2[%c0_1, %c0_2] : memref<32x256xf32, #tpu.memory_space<vmem>>, vector<32x256xf32>
    %cst = arith.constant dense<0.000000e+00> : vector<8x256xf32>
    %2 = tpu.matmul %0, %1, %cst {dimension_numbers = #tpu.dot_dimension_numbers<[1], [0], [0], [1], [0, 0, 1, 1], [], []>} : vector<8x32xf32>, vector<32x256xf32>, vector<8x256xf32> -> vector<8x256xf32>
    %c0_3 = arith.constant 0 : index
    %c0_4 = arith.constant 0 : index
    %3 = vector.load %arg3[%c0_3, %c0_4] : memref<1x256xf32, #tpu.memory_space<vmem>>, vector<1x256xf32>
    %4 = vector.broadcast %3 : vector<1x256xf32> to vector<8x256xf32>
    %5 = arith.addf %2, %4 : vector<8x256xf32>
    %6 = vector.extract_strided_slice %5 {offsets = [0, 0], sizes = [8, 32], strides = [1, 1]} : vector<8x256xf32> to vector<8x32xf32>
    %c0_5 = arith.constant 0 : index
    %c0_6 = arith.constant 0 : index
    %7 = vector.load %arg4[%c0_5, %c0_6] : memref<8x32xf32, #tpu.memory_space<vmem>>, vector<8x32xf32>
    tpu.vector_store %arg4[%c0_5, %c0_6], %6 {strides = array<i32>} : memref<8x32xf32, #tpu.memory_space<vmem>>, vector<8x32xf32>,
    %8 = vector.extract_strided_slice %5 {offsets = [0, 128], sizes = [8, 128], strides = [1, 1]} : vector<8x256xf32> to vector<8x128xf32>
    %9 = arith.mulf %8, %8 : vector<8x128xf32>
    %cst_7 = arith.constant dense<0.000000e+00> : vector<8xf32>
    %10 = vector.multi_reduction <add>, %9, %cst_7 [1] : vector<8x128xf32> to vector<8xf32>
    %11 = vector.shape_cast %10 : vector<8xf32> to vector<8x1xf32>
    %cst_8 = arith.constant 0.000000e+00 : f32
    %12 = vector.broadcast %cst_8 : f32 to vector<8x1xf32>
    %13 = arith.subf %12, %11 : vector<8x1xf32>
    %14 = tpu.transpose %13, [1, 0] : vector<8x1xf32> -> vector<1x8xf32>
    %c0_9 = arith.constant 0 : index
    %c0_10 = arith.constant 0 : index
    %15 = vector.load %arg5[%c0_9, %c0_10] : memref<1x8xf32, #tpu.memory_space<vmem>>, vector<1x8xf32>
    tpu.vector_store %arg5[%c0_9, %c0_10], %14 {strides = array<i32>} : memref<1x8xf32, #tpu.memory_space<vmem>>, vector<1x8xf32>,
    return
  }
  func.func @transform_0(%arg0: i32) -> (i32, i32) {
    %c0_i32 = arith.constant 0 : i32
    %c0_i32_0 = arith.constant 0 : i32
    return %arg0, %c0_i32 : i32, i32
  }
  func.func @transform_1(%arg0: i32) -> (i32, i32) {
    %c0_i32 = arith.constant 0 : i32
    %c0_i32_0 = arith.constant 0 : i32
    %c0_i32_1 = arith.constant 0 : i32
    return %c0_i32, %c0_i32_0 : i32, i32
  }
  func.func @transform_2(%arg0: i32) -> (i32, i32) {
    %c0_i32 = arith.constant 0 : i32
    %c0_i32_0 = arith.constant 0 : i32
    %c0_i32_1 = arith.constant 0 : i32
    return %c0_i32, %c0_i32_0 : i32, i32
  }
  func.func @transform_3(%arg0: i32) -> (i32, i32) {
    %c0_i32 = arith.constant 0 : i32
    %c0_i32_0 = arith.constant 0 : i32
    return %arg0, %c0_i32 : i32, i32
  }
  func.func @transform_4(%arg0: i32) -> (i32, i32) {
    %c0_i32 = arith.constant 0 : i32
    %c0_i32_0 = arith.constant 0 : i32
    return %c0_i32, %arg0 : i32, i32
  }
}

</mosaic_0001>

<llo_original>
// kernel: tpu_custom_call.1
$region0: #{tpu_custom_call.1}
  #allocation0 [shape = 'u32[]', space=smem, size = 0x4, offset = 0x4, fixed_abs, tag = 'smem constant byte address 0x4 - core index']
  #allocation1 [shape = 'u32[144,128]{1,0:T(1,128)}', space=vmem, size = 0x12000, scoped, tag = 'internal scratch']
  %s0 = inlined_call_operand.hbm [shape: f32[8,32], index: 0, kind: input, shape index: {}]
  %s1 = inlined_call_operand.hbm [shape: f32[32,256], index: 1, kind: input, shape index: {}]
  %s2 = inlined_call_operand.vmem [shape: f32[1,256], index: 2, kind: input, shape index: {}]
  %s3 = inlined_call_operand.hbm [shape: f32[8,32], index: 3, kind: output, shape index: {0}]
  %s4 = inlined_call_operand.hbm [shape: f32[1,8], index: 4, kind: output, shape index: {1}]
  %5 = xla_tuple %s3, %s4
  %s6 = sld [smem:[#allocation0]]
  $region38: #{tpu_custom_call.1} parent=0
    _
  %s8 = ssub.s32 1, %s6
  %s9 = scalar_select 0, %s8, %s6
  $region1: #{tpu_custom_call.1} parent=0
    #allocation2 [shape = 'u8[4096]{0}', space=vmem, size = 0x1000, scoped, tag = 'input window, operand 0, single buffered']
    #allocation3 [shape = 's32[1]{0}', space=sflag, size = 0x4, scoped, tag = 'scoped memory for tpu_custom_call.1']
    #allocation4 [shape = 's32[1]{0}', space=sflag, size = 0x4, scoped, tag = 'scoped memory for tpu_custom_call.1']
    #allocation5 [shape = 'u8[32768]{0}', space=vmem, size = 0x8000, scoped, tag = 'input window, operand 1, single buffered']
    #allocation6 [shape = 's32[1]{0}', space=sflag, size = 0x4, scoped, tag = 'scoped memory for tpu_custom_call.1']
    #allocation7 [shape = 'u8[4096]{0}', space=vmem, size = 0x1000, scoped, tag = 'output window, operand 0, single buffered']
    #allocation8 [shape = 'u8[512]{0}', space=vmem, size = 0x400, scoped, tag = 'output window, operand 1, single buffered']
    #allocation9 [shape = 's32[1]{0}', space=sflag, size = 0x4, scoped, tag = 'scoped memory for tpu_custom_call.1']
    %10 = vsyncpa [#allocation3], 0
    %11 = vsyncpa [#allocation6], 0
    %12 = vsyncpa [#allocation4], 0
    %13 = vsyncpa [#allocation9], 0
    // Predicated region
    $region2: #{tpu_custom_call.1} parent=1 // pred_check
      _
    $region3: #{tpu_custom_call.1} parent=1 // pred_check_branch
      %15 = sbr.rel (0) target = $region5
    $region4: #{tpu_custom_call.1} parent=1 // pred_region
      %s17 = ssub.s32 128, 128
      %18 = vsyncadd [#allocation3], %s17
      %s20 = sshll.u32 [#allocation2], 4
      %s21 = int_to_ptr.vmem [resolvable:$true] %s20
      %23 = dma.hbm_to_vmem [thread:$0]  %s0, 128, %s21, [#allocation3]
    $region5: #{tpu_custom_call.1} parent=1 // pred_fallthru
      _
    // Predicated region
    $region6: #{tpu_custom_call.1} parent=1 // pred_check
      _
    $region7: #{tpu_custom_call.1} parent=1 // pred_check_branch
      %25 = sbr.rel (0) target = $region9
    $region8: #{tpu_custom_call.1} parent=1 // pred_region
      %s27 = ssub.s32 1024, 1024
      %28 = vsyncadd [#allocation6], %s27
      %s29 = sshll.u32 [#allocation5], 4
      %s30 = int_to_ptr.vmem [resolvable:$true] %s29
      %35 = dma.hbm_to_vmem [thread:$0]  %s1, 1024, %s30, [#allocation6], 256, 256, 16
    $region9: #{tpu_custom_call.1} parent=1 // pred_fallthru
      _
    // Predicated region
    $region10: #{tpu_custom_call.1} parent=1 // pred_check
      _
    $region11: #{tpu_custom_call.1} parent=1 // pred_check_branch
      %37 = sbr.rel (0) target = $region13
    $region12: #{tpu_custom_call.1} parent=1 // pred_region
      _
    $region13: #{tpu_custom_call.1} parent=1 // pred_fallthru
      _
    // Predicated region
    $region14: #{tpu_custom_call.1} parent=1 // pred_check
      _
    $region15: #{tpu_custom_call.1} parent=1 // pred_check_branch
      %39 = sbr.rel (0) target = $region17
    $region16: #{tpu_custom_call.1} parent=1 // pred_region
      %40 = dma.done [#allocation3], 128
    $region17: #{tpu_custom_call.1} parent=1 // pred_fallthru
      _
    // Predicated region
    $region18: #{tpu_custom_call.1} parent=1 // pred_check
      _
    $region19: #{tpu_custom_call.1} parent=1 // pred_check_branch
      %42 = sbr.rel (0) target = $region21
    $region20: #{tpu_custom_call.1} parent=1 // pred_region
      %43 = dma.done [#allocation6], 1024
    $region21: #{tpu_custom_call.1} parent=1 // pred_fallthru
      _
    %v44 = vld [vmem:[#allocation2] sm:$0xff]
    %v45 = vld [vmem:[#allocation5] sm:$0xff]
    %v46 = vld [vmem:[#allocation5 + $0x8] sm:$0xff]
    %v47 = vld [vmem:[#allocation5 + $0x10] sm:$0xff]
    %v48 = vld [vmem:[#allocation5 + $0x18] sm:$0xff]
    %v49 = vld [vmem:[#allocation5 + $0x20] sm:$0xff]
    %v50 = vld [vmem:[#allocation5 + $0x28] sm:$0xff]
    %v51 = vld [vmem:[#allocation5 + $0x30] sm:$0xff]
    %v52 = vld [vmem:[#allocation5 + $0x38] sm:$0xff]
    %v53 = vld [vmem:[%s2] sm:$0x3]
    %v55 = vlaneseq
    %v56 = vshrl.u32 %v55, 7
    %v57 = vsub.s32 0, %v56
    %v58 = vrot.slane %v53, %v57
    %v59 = vlaneseq
    %v60 = vshrl.u32 %v59, 7
    %v61 = vsub.s32 1, %v60
    %v62 = vrot.slane %v53, %v61
    %vm65 = vcmask 261120
    %v67 = vsel %vm65, %v44, 0
    %69 = vmatprep.subr.mxu0 0.0
    %70 = vmatpush1.msra.mxu0 0.0
    %71 = vmatprep.subr.mxu0 0.0
    %72 = vmatpush1.msra.mxu0 0.0
    %73 = vmatprep.subr.mxu0 0.0
    %74 = vmatpush1.msra.mxu0 0.0
    %75 = vmatprep.subr.mxu0 0.0
    %76 = vmatpush1.msra.mxu0 0.0
    %77 = vmatprep.subr.mxu0 0.0
    %78 = vmatpush1.msra.mxu0 0.0
    %79 = vmatprep.subr.mxu0 0.0
    %80 = vmatpush1.msra.mxu0 0.0
    %81 = vmatprep.subr.mxu0 0.0
    %82 = vmatpush1.msra.mxu0 0.0
    %83 = vmatprep.subr.mxu0 0.0
    %84 = vmatpush1.msra.mxu0 0.0
    %85 = vmatprep.subr.mxu0 0.0
    %86 = vmatpush1.msra.mxu0 0.0
    %87 = vmatprep.subr.mxu0 0.0
    %88 = vmatpush1.msra.mxu0 0.0
    %89 = vmatprep.subr.mxu0 0.0
    %90 = vmatpush1.msra.mxu0 0.0
    %91 = vmatprep.subr.mxu0 0.0
    %92 = vmatpush1.msra.mxu0 0.0
    %93 = vmatprep.subr.mxu0 %v52
    %94 = vmatpush1.msra.mxu0 %v51
    %95 = vmatprep.subr.mxu0 %v50
    %96 = vmatpush1.msra.mxu0 %v49
    %97 = vmatprep.subr.mxu0 %v48
    %98 = vmatpush1.msra.mxu0 %v47
    %99 = vmatprep.subr.mxu0 %v46
    %100 = vmatpush1.msra.mxu0 %v45
    %101 = vmatprep.subr.mxu0 0.0
    %102 = vmatpush2.msra.mxu0 0.0
    %103 = vmatprep.subr.mxu0 0.0
    %104 = vmatpush2.msra.mxu0 0.0
    %105 = vmatprep.subr.mxu0 0.0
    %106 = vmatpush2.msra.mxu0 0.0
    %107 = vmatprep.subr.mxu0 0.0
    %108 = vmatpush2.msra.mxu0 0.0
    %109 = vmatprep.subr.mxu0 0.0
    %110 = vmatpush2.msra.mxu0 0.0
    %111 = vmatprep.subr.mxu0 0.0
    %112 = vmatpush2.msra.mxu0 0.0
    %113 = vmatprep.subr.mxu0 0.0
    %114 = vmatpush2.msra.mxu0 0.0
    %115 = vmatprep.subr.mxu0 0.0
    %116 = vmatpush2.msra.mxu0 0.0
    %117 = vmatprep.subr.mxu0 0.0
    %118 = vmatpush2.msra.mxu0 0.0
    %119 = vmatprep.subr.mxu0 0.0
    %120 = vmatpush2.msra.mxu0 0.0
    %121 = vmatprep.subr.mxu0 0.0
    %122 = vmatpush2.msra.mxu0 0.0
    %123 = vmatprep.subr.mxu0 0.0
    %124 = vmatpush2.msra.mxu0 0.0
    %125 = vmatprep.subr.mxu0 0.0
    %126 = vmatpush2.msra.mxu0 0.0
    %127 = vmatprep.subr.mxu0 0.0
    %128 = vmatpush2.msra.mxu0 0.0
    %129 = vmatprep.subr.mxu0 0.0
    %130 = vmatpush2.msra.mxu0 0.0
    %131 = vmatprep.subr.mxu0 0.0
    %132 = vmatpush2.msra.mxu0 0.0
    %133 = vmatprep.mubr.f32.mxu0 0.0
    %134 = vmatmul.mubr.f32.gmra.mxu0 %v67
    %v135 = vpop.f32.mrf.mxu0
    %v136 = vadd.f32 %v58, %v135
    %v137 = vpop.f32.mrf.mxu0
    %v138 = vadd.f32 %v62, %v137
    %139 = vdwg.mxu0
    %140 = vst.msk [vmem:[#allocation7] sm:$0xff] %vm65, %v136
    %v141 = vmul.f32 %v138, %v138
    %142 = vadd.xlane.f32.xlu0 %v141
    %v143 = vpop.xlane.xlu0 %142
    %v144 = vsub.f32 0.0, %v143
    %145 = vxpose.xlu0.b32.start [1/16] %v144, 128
    %146 = vxpose.xlu0.b32.cont [2/16] 0.0, 128
    %147 = vxpose.xlu0.b32.cont [3/16] 0.0, 128
    %148 = vxpose.xlu0.b32.cont [4/16] 0.0, 128
    %149 = vxpose.xlu0.b32.cont [5/16] 0.0, 128
    %150 = vxpose.xlu0.b32.cont [6/16] 0.0, 128
    %151 = vxpose.xlu0.b32.cont [7/16] 0.0, 128
    %152 = vxpose.xlu0.b32.cont [8/16] 0.0, 128
    %153 = vxpose.xlu0.b32.cont [9/16] 0.0, 128
    %154 = vxpose.xlu0.b32.cont [10/16] 0.0, 128
    %155 = vxpose.xlu0.b32.cont [11/16] 0.0, 128
    %156 = vxpose.xlu0.b32.cont [12/16] 0.0, 128
    %157 = vxpose.xlu0.b32.cont [13/16] 0.0, 128
    %158 = vxpose.xlu0.b32.cont [14/16] 0.0, 128
    %159 = vxpose.xlu0.b32.cont [15/16] 0.0, 128
    %160 = vxpose.xlu0.b32.end [16/16] 0.0, 128
    %v161 = vpop.trf.xlu0
    %v162 = vpop.trf.xlu0
    %v163 = vpop.trf.xlu0
    %v164 = vpop.trf.xlu0
    %v165 = vpop.trf.xlu0
    %v166 = vpop.trf.xlu0
    %v167 = vpop.trf.xlu0
    %v168 = vpop.trf.xlu0
    %v169 = vpop.trf.xlu0
    %v170 = vpop.trf.xlu0
    %v171 = vpop.trf.xlu0
    %v172 = vpop.trf.xlu0
    %v173 = vpop.trf.xlu0
    %v174 = vpop.trf.xlu0
    %v175 = vpop.trf.xlu0
    %v176 = vpop.trf.xlu0
    %vm177 = vcmask 57344
    %178 = vst.msk [vmem:[#allocation8] sm:$0x1] %vm177, %v161
    // Predicated region
    $region22: #{tpu_custom_call.1} parent=1 // pred_check
      _
    $region23: #{tpu_custom_call.1} parent=1 // pred_check_branch
      %180 = sbr.rel (0) target = $region25
    $region24: #{tpu_custom_call.1} parent=1 // pred_region
      %s182 = ssub.s32 128, 128
      %183 = vsyncadd [#allocation4], %s182
      %s185 = sshll.u32 [#allocation7], 4
      %s186 = int_to_ptr.vmem [resolvable:$true] %s185
      %188 = dma.vmem_to_hbm [thread:$0]  %s186, 128, %s3, [#allocation4]
    $region25: #{tpu_custom_call.1} parent=1 // pred_fallthru
      _
    // Predicated region
    $region26: #{tpu_custom_call.1} parent=1 // pred_check
      _
    $region27: #{tpu_custom_call.1} parent=1 // pred_check_branch
      %190 = sbr.rel (0) target = $region29
    $region28: #{tpu_custom_call.1} parent=1 // pred_region
      %s192 = ssub.s32 16, 16
      %193 = vsyncadd [#allocation9], %s192
      %s195 = sshll.u32 [#allocation8], 4
      %s196 = int_to_ptr.vmem [resolvable:$true] %s195
      %198 = dma.vmem_to_hbm [thread:$0]  %s196, 16, %s4, [#allocation9]
    $region29: #{tpu_custom_call.1} parent=1 // pred_fallthru
      _
    // Predicated region
    $region30: #{tpu_custom_call.1} parent=1 // pred_check
      _
    $region31: #{tpu_custom_call.1} parent=1 // pred_check_branch
      %200 = sbr.rel (0) target = $region33
    $region32: #{tpu_custom_call.1} parent=1 // pred_region
      %201 = dma.done [#allocation4], 128
    $region33: #{tpu_custom_call.1} parent=1 // pred_fallthru
      _
    // Predicated region
    $region34: #{tpu_custom_call.1} parent=1 // pred_check
      _
    $region35: #{tpu_custom_call.1} parent=1 // pred_check_branch
      %203 = sbr.rel (0) target = $region37
    $region36: #{tpu_custom_call.1} parent=1 // pred_region
      %204 = dma.done [#allocation9], 16
    $region37: #{tpu_custom_call.1} parent=1 // pred_fallthru
      _
    %205 = vsyncpa [#allocation3], 1
    %206 = vsyncpa [#allocation6], 1
    %207 = vsyncpa [#allocation4], 1
    %208 = vsyncpa [#allocation9], 1

</llo_original>
